<compile_context>
chip_gen: v6e
topology: v6e:2x2x1
jax: 0.10.0
libtpu: 0.0.40
codegen_flags: <defaults>
</compile_context>

<pallas_src>
import functools

import jax
import jax.numpy as jnp
from jax.experimental import pallas as pl
from jax.experimental.pallas import tpu as pltpu


def _round_up(x: int, m: int) -> int:
    return ((x + m - 1) // m) * m


def _ceil_div(a: int, b: int) -> int:
    return -(-a // b)


def _balanced_tiles(dim: int, granule: int, max_tile: int):
    """Tile `dim` (padded to `granule`) with tiles <= max_tile, minimizing padding."""
    d = _round_up(max(dim, granule), granule)
    n = max(1, _ceil_div(d, max_tile))
    t = _round_up(_ceil_div(d, n), granule)
    n = _ceil_div(d, t)
    return t, n, t * n


def _batch_tiles(batch: int, max_tile: int):
    """Balanced batch tiling (granule 8); forces >=2 tiles when batch >= 16 so the
    'parallel' batch axis can be sharded across v7x's two TensorCores."""
    b8 = _round_up(max(batch, 8), 8)
    n = max(_ceil_div(b8, max_tile), 2 if b8 >= 16 else 1)
    t = _round_up(_ceil_div(b8, n), 8)
    n = _ceil_div(b8, t)
    return t, n, t * n


# ----------------------------------------------------------------------------
# Tiny-shape path: one block, no padding, weight kept in PyTorch layout.
# ----------------------------------------------------------------------------
def _linear_small_kernel(x_ref, w_ref, b_ref, o_ref):
    # x: (B, D_in), w: (D_out, D_in) PyTorch layout, b: (1, D_out)
    acc = jax.lax.dot_general(
        x_ref[...], w_ref[...],
        dimension_numbers=(((1,), (1,)), ((), ())),   # == x @ w.T, no transpose op
        preferred_element_type=jnp.float32,
    )
    o_ref[...] = (acc + b_ref[...]).astype(o_ref.dtype)


@jax.jit
def _linear_small(x, weight, bias2d):
    batch = x.shape[0]
    d_out = weight.shape[0]
    return pl.pallas_call(
        _linear_small_kernel,
        out_shape=jax.ShapeDtypeStruct((batch, d_out), x.dtype),
        in_specs=[pl.BlockSpec(memory_space=pltpu.MemorySpace.VMEM)] * 3,
        out_specs=pl.BlockSpec(memory_space=pltpu.MemorySpace.VMEM),
    )(x, weight, bias2d)


# ----------------------------------------------------------------------------
# General path: (B, N, K)-tiled matmul with a VMEM accumulator.
# ----------------------------------------------------------------------------
def _linear_tiled_kernel(x_ref, w_ref, b_ref, o_ref, acc_ref):
    # x: (tb, tk), w: (tk, tn) pre-transposed, b: (1, tn), o/acc: (tb, tn)
    k = pl.program_id(2)

    @pl.when(k == 0)
    def _():
        acc_ref[...] = jnp.zeros_like(acc_ref)

    acc_ref[...] += jnp.dot(x_ref[...], w_ref[...],
                            preferred_element_type=jnp.float32)

    @pl.when(k == pl.num_programs(2) - 1)
    def _():
        o_ref[...] = (acc_ref[...] + b_ref[...]).astype(o_ref.dtype)


def prepare_linear_params(weight, bias, *, block_k=512, block_n=512):
    """One-time parameter prep (hoisted out of the per-call path).

    Pads D_in/D_out to lane-dense tile multiples and pre-transposes the weight
    to (D_in_p, D_out_p). Returns (w_t, bias2d, meta); splat `meta` into
    linear_forward_prepared(**meta) on every call.
    """
    d_out, d_in = weight.shape
    tk, nk, d_in_p = _balanced_tiles(d_in, 128, block_k)
    tn, nn, d_out_p = _balanced_tiles(d_out, 128, block_n)
    w_t = jnp.pad(weight, ((0, d_out_p - d_out), (0, d_in_p - d_in))).T
    bias2d = jnp.pad(bias, (0, d_out_p - d_out)).reshape(1, d_out_p)
    meta = dict(d_out=d_out, tk=tk, nk=nk, tn=tn, nn=nn)
    return w_t, bias2d, meta


@functools.partial(jax.jit,
                   static_argnames=("d_out", "tk", "nk", "tn", "nn", "block_b"))
def linear_forward_prepared(x, w_t, bias2d, *, d_out, tk, nk, tn, nn,
                            block_b=1024):
    batch, d_in = x.shape
    d_in_p, d_out_p = w_t.shape
    assert d_in_p == tk * nk and d_out_p == tn * nn and d_in <= d_in_p

    tb, nb, b_p = _batch_tiles(batch, block_b)
    x_p = jnp.pad(x, ((0, b_p - batch), (0, d_in_p - d_in)))

    # Single-buffer operands whose block index never changes (saves VMEM; matters
    # most under v7x's 64 MiB physical / 32 MiB default scoped limit).
    w_resident = (nk == 1 and nn == 1)
    b_resident = (nn == 1)
    w_kwargs = dict(pipeline_mode=pl.Buffered(1)) if w_resident else {}
    b_kwargs = dict(pipeline_mode=pl.Buffered(1)) if b_resident else {}
    w_bufs = 1 if w_resident else 2
    b_bufs = 1 if b_resident else 2

    bytes_needed = 4 * (2 * tb * tk          # x stream (double-buffered)
                        + w_bufs * tk * tn   # weight tile(s)
                        + b_bufs * 8 * tn    # bias tile(s), sublane-padded
                        + 2 * tb * tn        # output (double-buffered)
                        + tb * tn)           # f32 accumulator scratch
    vmem_limit = int(min(max(2 * bytes_needed, 32 << 20), 64 << 20))

    cost = pl.CostEstimate(
        flops=2 * batch * d_in * d_out,
        transcendentals=0,
        bytes_accessed=4 * (batch * d_in + d_in_p * d_out_p + d_out_p
                            + batch * d_out),
    )

    out_p = pl.pallas_call(
        _linear_tiled_kernel,
        out_shape=jax.ShapeDtypeStruct((b_p, d_out_p), x.dtype),
        grid_spec=pltpu.PrefetchScalarGridSpec(
            num_scalar_prefetch=0,
            grid=(nb, nn, nk),                      # reduction axis (k) last
            in_specs=[
                pl.BlockSpec((tb, tk), lambda i, j, k: (i, k)),
                pl.BlockSpec((tk, tn), lambda i, j, k: (k, j), **w_kwargs),
                pl.BlockSpec((1, tn), lambda i, j, k: (0, j), **b_kwargs),
            ],
            out_specs=pl.BlockSpec((tb, tn), lambda i, j, k: (i, j)),
            scratch_shapes=[pltpu.VMEM((tb, tn), jnp.float32)],
        ),
        compiler_params=pltpu.CompilerParams(
            dimension_semantics=("parallel", "parallel", "arbitrary"),
            vmem_limit_bytes=vmem_limit,
        ),
        cost_estimate=cost,
    )(x_p, w_t, bias2d)

    return out_p[:batch, :d_out]


def linear_forward(x, weight, bias, *, block_b=1024, block_k=512, block_n=512):
    """Exact nn.Linear semantics: y = x @ weight.T + bias (float32).

    Convenience single-call entry point. For repeated calls (training loops),
    call prepare_linear_params() once and reuse linear_forward_prepared().
    """
    batch, d_in = x.shape
    d_out = weight.shape[0]
    # Tiny-shape fast path: whole problem fits in one VMEM block; pass arrays
    # unpadded (full-array blocks) so there are no pad/slice HLOs at all.
    if batch <= 256 and d_in <= 256 and d_out <= 256:
        return _linear_small(x, weight, bias.reshape(1, d_out))
    w_t, bias2d, meta = prepare_linear_params(weight, bias,
                                              block_k=block_k, block_n=block_n)
    return linear_forward_prepared(x, w_t, bias2d, block_b=block_b, **meta)


# ----------------------------------------------------------------------------
# Demo / self-test
# ----------------------------------------------------------------------------
def _init_linear(key, d_in, d_out):
    # Mimics nn.Linear init: U(-1/sqrt(d_in), 1/sqrt(d_in))
    kw, kb = jax.random.split(key)
    bound = 1.0 / jnp.sqrt(jnp.float32(d_in))
    w = jax.random.uniform(kw, (d_out, d_in), minval=-bound, maxval=bound,
                           dtype=jnp.float32)
    b = jax.random.uniform(kb, (d_out,), minval=-bound, maxval=bound,
                           dtype=jnp.float32)
    return w, b


def _assert_close(got, ref, tol=1e-3):
    err = float(jnp.max(jnp.abs(got - ref)))
    scale = float(jnp.max(jnp.abs(ref))) + 1.0
    assert err <= tol * scale, f"max_abs_err={err} (scale={scale})"


if __name__ == "__main__":
    key = jax.random.PRNGKey(0)
    k1, k2, k3, kx1, kx2, kx3 = jax.random.split(key, 6)
    hp = jax.lax.Precision.HIGHEST

    # 1) Spec shapes: LinearRegressionModel(input_dim=32, output_dim=16), batch=8
    #    -> tiny unpadded single-block path.
    w1, b1 = _init_linear(k1, 32, 16)
    x1 = jax.random.normal(kx1, (8, 32), dtype=jnp.float32)
    y1 = jax.block_until_ready(linear_forward(x1, w1, b1))
    assert y1.shape == (8, 16)
    _assert_close(y1, jnp.dot(x1, w1.T, precision=hp) + b1)

    # 2) Medium shape -> tiled path with a resident, single-buffered weight and
    #    the batch split across 2 tiles (v7x megacore).
    w2, b2 = _init_linear(k2, 256, 256)
    x2 = jax.random.normal(kx2, (512, 256), dtype=jnp.float32)
    w2p, b2p, meta2 = prepare_linear_params(w2, b2)      # hoisted, done once
    y2 = jax.block_until_ready(linear_forward_prepared(x2, w2p, b2p, **meta2))
    assert y2.shape == (512, 256)
    _assert_close(y2, jnp.dot(x2, w2.T, precision=hp) + b2)

    # 3) Non-aligned shape -> exercises K/N tiling, accumulator init/writeback,
    #    and balanced batch padding.
    w3, b3 = _init_linear(k3, 640, 768)
    x3 = jax.random.normal(kx3, (520, 640), dtype=jnp.float32)
    y3 = jax.block_until_ready(linear_forward(x3, w3, b3))
    assert y3.shape == (520, 768)
    _assert_close(y3, jnp.dot(x3, w3.T, precision=hp) + b3)

    print("KERNEL_OK")
</pallas_src>

<mosaic_0001>
module attributes {stable_mosaic.version = 11 : i64} {
  func.func @_linear_small_kernel(%arg0: memref<8x32xf32, #tpu.memory_space<vmem>>, %arg1: memref<16x32xf32, #tpu.memory_space<vmem>>, %arg2: memref<1x16xf32, #tpu.memory_space<vmem>>, %arg3: memref<8x16xf32, #tpu.memory_space<vmem>>) attributes {dimension_semantics = [], scalar_prefetch = 0 : i64, scratch_operands = 0 : i64, tpu.core_type = #tpu.core_type<tc>} {
    %c0 = arith.constant 0 : index
    %c0_0 = arith.constant 0 : index
    %0 = vector.load %arg0[%c0, %c0_0] : memref<8x32xf32, #tpu.memory_space<vmem>>, vector<8x32xf32>
    %c0_1 = arith.constant 0 : index
    %c0_2 = arith.constant 0 : index
    %1 = vector.load %arg1[%c0_1, %c0_2] : memref<16x32xf32, #tpu.memory_space<vmem>>, vector<16x32xf32>
    %cst = arith.constant dense<0.000000e+00> : vector<8x16xf32>
    %2 = tpu.matmul %0, %1, %cst {dimension_numbers = #tpu.dot_dimension_numbers<[1], [1], [0], [0], [0, 0, 1, 0], [], []>} : vector<8x32xf32>, vector<16x32xf32>, vector<8x16xf32> -> vector<8x16xf32>
    %c0_3 = arith.constant 0 : index
    %c0_4 = arith.constant 0 : index
    %3 = vector.load %arg2[%c0_3, %c0_4] : memref<1x16xf32, #tpu.memory_space<vmem>>, vector<1x16xf32>
    %4 = vector.broadcast %3 : vector<1x16xf32> to vector<8x16xf32>
    %5 = arith.addf %2, %4 : vector<8x16xf32>
    %c0_5 = arith.constant 0 : index
    %c0_6 = arith.constant 0 : index
    %6 = vector.load %arg3[%c0_5, %c0_6] : memref<8x16xf32, #tpu.memory_space<vmem>>, vector<8x16xf32>
    tpu.vector_store %arg3[%c0_5, %c0_6], %5 {strides = array<i32>} : memref<8x16xf32, #tpu.memory_space<vmem>>, vector<8x16xf32>,
    return
  }
}

</mosaic_0001>

<llo_original>
// kernel: _linear_small.1
$region0: #{_linear_small.1}
  #allocation0 [shape = 'u32[]', space=smem, size = 0x4, offset = 0x4, fixed_abs, tag = 'smem constant byte address 0x4 - core index']
  #allocation1 [shape = 'u32[144,128]{1,0:T(1,128)}', space=vmem, size = 0x12000, scoped, tag = 'internal scratch']
  %s0 = inlined_call_operand.hbm [shape: f32[8,32], index: 0, kind: input, shape index: {}]
  %s1 = inlined_call_operand.hbm [shape: f32[16,32], index: 1, kind: input, shape index: {}]
  %s2 = inlined_call_operand.vmem [shape: f32[1,16], index: 2, kind: input, shape index: {}]
  %s3 = inlined_call_operand.hbm [shape: f32[8,16], index: 3, kind: output, shape index: {}]
  %s4 = sld [smem:[#allocation0]]
  $region30: #{_linear_small.1} parent=0
    _
  %s6 = ssub.s32 1, %s4
  %s7 = scalar_select 0, %s6, %s4
  $region1: #{_linear_small.1} parent=0
    #allocation2 [shape = 'u8[4096]{0}', space=vmem, size = 0x1000, scoped, tag = 'input window, operand 0, single buffered']
    #allocation3 [shape = 's32[1]{0}', space=sflag, size = 0x4, scoped, tag = 'scoped memory for _linear_small.1']
    #allocation4 [shape = 's32[1]{0}', space=sflag, size = 0x4, scoped, tag = 'scoped memory for _linear_small.1']
    #allocation5 [shape = 'u8[8192]{0}', space=vmem, size = 0x2000, scoped, tag = 'input window, operand 1, single buffered']
    #allocation6 [shape = 's32[1]{0}', space=sflag, size = 0x4, scoped, tag = 'scoped memory for _linear_small.1']
    #allocation7 [shape = 'u8[4096]{0}', space=vmem, size = 0x1000, scoped, tag = 'output window, operand 0, single buffered']
    %8 = vsyncpa [#allocation3], 0
    %9 = vsyncpa [#allocation6], 0
    %10 = vsyncpa [#allocation4], 0
    // Predicated region
    $region2: #{_linear_small.1} parent=1 // pred_check
      _
    $region3: #{_linear_small.1} parent=1 // pred_check_branch
      %12 = sbr.rel (0) target = $region5
    $region4: #{_linear_small.1} parent=1 // pred_region
      %s14 = ssub.s32 128, 128
      %15 = vsyncadd [#allocation3], %s14
      %s17 = sshll.u32 [#allocation2], 4
      %s18 = int_to_ptr.vmem [resolvable:$true] %s17
      %20 = dma.hbm_to_vmem [thread:$0]  %s0, 128, %s18, [#allocation3]
    $region5: #{_linear_small.1} parent=1 // pred_fallthru
      _
    // Predicated region
    $region6: #{_linear_small.1} parent=1 // pred_check
      _
    $region7: #{_linear_small.1} parent=1 // pred_check_branch
      %22 = sbr.rel (0) target = $region9
    $region8: #{_linear_small.1} parent=1 // pred_region
      %s24 = ssub.s32 256, 256
      %25 = vsyncadd [#allocation6], %s24
      %s26 = sshll.u32 [#allocation5], 4
      %s27 = int_to_ptr.vmem [resolvable:$true] %s26
      %32 = dma.hbm_to_vmem [thread:$0]  %s1, 256, %s27, [#allocation6], 128, 128, 8
    $region9: #{_linear_small.1} parent=1 // pred_fallthru
      _
    // Predicated region
    $region10: #{_linear_small.1} parent=1 // pred_check
      _
    $region11: #{_linear_small.1} parent=1 // pred_check_branch
      %34 = sbr.rel (0) target = $region13
    $region12: #{_linear_small.1} parent=1 // pred_region
      _
    $region13: #{_linear_small.1} parent=1 // pred_fallthru
      _
    // Predicated region
    $region14: #{_linear_small.1} parent=1 // pred_check
      _
    $region15: #{_linear_small.1} parent=1 // pred_check_branch
      %36 = sbr.rel (0) target = $region17
    $region16: #{_linear_small.1} parent=1 // pred_region
      %37 = dma.done [#allocation3], 128
    $region17: #{_linear_small.1} parent=1 // pred_fallthru
      _
    // Predicated region
    $region18: #{_linear_small.1} parent=1 // pred_check
      _
    $region19: #{_linear_small.1} parent=1 // pred_check_branch
      %39 = sbr.rel (0) target = $region21
    $region20: #{_linear_small.1} parent=1 // pred_region
      %40 = dma.done [#allocation6], 256
    $region21: #{_linear_small.1} parent=1 // pred_fallthru
      _
    %v41 = vld [vmem:[#allocation2] sm:$0xff]
    %v42 = vld [vmem:[#allocation5] sm:$0xff]
    %v43 = vld [vmem:[#allocation5 + $0x8] sm:$0xff]
    %v44 = vld [vmem:[%s2] sm:$0x1]
    %v46 = vlaneseq
    %v47 = vshrl.u32 %v46, 7
    %v48 = vsub.s32 0, %v47
    %v49 = vrot.slane %v44, %v48
    %vm51 = vcmask 261120
    %v53 = vsel %vm51, %v41, 0
    %v56 = vsel %vm51, %v42, 0
    %v59 = vsel %vm51, %v43, 0
    %61 = vmatprep.subr.mxu0 0.0
    %62 = vmatpush1.xpose.msra.mxu0 0.0
    %63 = vmatprep.subr.mxu0 0.0
    %64 = vmatpush1.xpose.msra.mxu0 0.0
    %65 = vmatprep.subr.mxu0 0.0
    %66 = vmatpush1.xpose.msra.mxu0 0.0
    %67 = vmatprep.subr.mxu0 0.0
    %68 = vmatpush1.xpose.msra.mxu0 0.0
    %69 = vmatprep.subr.mxu0 0.0
    %70 = vmatpush1.xpose.msra.mxu0 0.0
    %71 = vmatprep.subr.mxu0 0.0
    %72 = vmatpush1.xpose.msra.mxu0 0.0
    %73 = vmatprep.subr.mxu0 0.0
    %74 = vmatpush1.xpose.msra.mxu0 0.0
    %75 = vmatprep.subr.mxu0 0.0
    %76 = vmatpush1.xpose.msra.mxu0 0.0
    %77 = vmatprep.subr.mxu0 0.0
    %78 = vmatpush1.xpose.msra.mxu0 0.0
    %79 = vmatprep.subr.mxu0 0.0
    %80 = vmatpush1.xpose.msra.mxu0 0.0
    %81 = vmatprep.subr.mxu0 0.0
    %82 = vmatpush1.xpose.msra.mxu0 0.0
    %83 = vmatprep.subr.mxu0 0.0
    %84 = vmatpush1.xpose.msra.mxu0 0.0
    %85 = vmatprep.subr.mxu0 0.0
    %86 = vmatpush1.xpose.msra.mxu0 0.0
    %87 = vmatprep.subr.mxu0 0.0
    %88 = vmatpush1.xpose.msra.mxu0 0.0
    %89 = vmatprep.subr.mxu0 0.0
    %90 = vmatpush1.xpose.msra.mxu0 %v59
    %91 = vmatprep.subr.mxu0 0.0
    %92 = vmatpush1.xpose.msra.mxu0 %v56
    %93 = vmatprep.subr.mxu0 0.0
    %94 = vmatpush2.xpose.msra.mxu0 0.0
    %95 = vmatprep.subr.mxu0 0.0
    %96 = vmatpush2.xpose.msra.mxu0 0.0
    %97 = vmatprep.subr.mxu0 0.0
    %98 = vmatpush2.xpose.msra.mxu0 0.0
    %99 = vmatprep.subr.mxu0 0.0
    %100 = vmatpush2.xpose.msra.mxu0 0.0
    %101 = vmatprep.subr.mxu0 0.0
    %102 = vmatpush2.xpose.msra.mxu0 0.0
    %103 = vmatprep.subr.mxu0 0.0
    %104 = vmatpush2.xpose.msra.mxu0 0.0
    %105 = vmatprep.subr.mxu0 0.0
    %106 = vmatpush2.xpose.msra.mxu0 0.0
    %107 = vmatprep.subr.mxu0 0.0
    %108 = vmatpush2.xpose.msra.mxu0 0.0
    %109 = vmatprep.subr.mxu0 0.0
    %110 = vmatpush2.xpose.msra.mxu0 0.0
    %111 = vmatprep.subr.mxu0 0.0
    %112 = vmatpush2.xpose.msra.mxu0 0.0
    %113 = vmatprep.subr.mxu0 0.0
    %114 = vmatpush2.xpose.msra.mxu0 0.0
    %115 = vmatprep.subr.mxu0 0.0
    %116 = vmatpush2.xpose.msra.mxu0 0.0
    %117 = vmatprep.subr.mxu0 0.0
    %118 = vmatpush2.xpose.msra.mxu0 0.0
    %119 = vmatprep.subr.mxu0 0.0
    %120 = vmatpush2.xpose.msra.mxu0 0.0
    %121 = vmatprep.subr.mxu0 0.0
    %122 = vmatpush2.xpose.msra.mxu0 0.0
    %123 = vmatprep.subr.mxu0 0.0
    %124 = vmatpush2.xpose.msra.mxu0 0.0
    %125 = vmatprep.mubr.f32.mxu0 0.0
    %126 = vmatmul.mubr.f32.gmra.mxu0 %v53
    %v127 = vpop.f32.mrf.mxu0
    %v128 = vadd.f32 %v49, %v127
    %v129 = vpop.f32.mrf.mxu0
    %130 = vdwg.mxu0
    %vm131 = vcmask 130048
    %132 = vst.msk [vmem:[#allocation7] sm:$0xff] %vm131, %v128
    // Predicated region
    $region22: #{_linear_small.1} parent=1 // pred_check
      _
    $region23: #{_linear_small.1} parent=1 // pred_check_branch
      %134 = sbr.rel (0) target = $region25
    $region24: #{_linear_small.1} parent=1 // pred_region
      %s136 = ssub.s32 128, 128
      %137 = vsyncadd [#allocation4], %s136
      %s139 = sshll.u32 [#allocation7], 4
      %s140 = int_to_ptr.vmem [resolvable:$true] %s139
      %142 = dma.vmem_to_hbm [thread:$0]  %s140, 128, %s3, [#allocation4]
    $region25: #{_linear_small.1} parent=1 // pred_fallthru
      _
    // Predicated region
    $region26: #{_linear_small.1} parent=1 // pred_check
      _
    $region27: #{_linear_small.1} parent=1 // pred_check_branch
      %144 = sbr.rel (0) target = $region29
    $region28: #{_linear_small.1} parent=1 // pred_region
      %145 = dma.done [#allocation4], 128
    $region29: #{_linear_small.1} parent=1 // pred_fallthru
      _
    %146 = vsyncpa [#allocation3], 1
    %147 = vsyncpa [#allocation6], 1
    %148 = vsyncpa [#allocation4], 1

</llo_original>
